<compile_context>
chip_gen: v7x
topology: tpu7x:2x2x1
jax: 0.10.0
libtpu: 0.0.40
codegen_flags: <defaults>
</compile_context>

<pallas_src>
import math
from functools import partial

import jax
import jax.numpy as jnp
from jax.experimental import pallas as pl
from jax.experimental.pallas import tpu as pltpu


# Max flattened contraction/output width (num_blocks*din / num_blocks*dout) for
# which the single fused block-diagonal matmul is used.
_FUSE_MAX_FLAT = 1024
# Explicit VMEM budget: fits v7x's 64 MiB physical VMEM with headroom; well
# under v5e/v6e's 128 MiB.
_VMEM_LIMIT_BYTES = 48 * 1024 * 1024


# --------------------- fused block-diagonal path (small dims) ---------------------

def _fused_kernel_bias(x_ref, w_ref, b_ref, o_ref):
    # x_ref: (tm, K), w_ref: (K, N), b_ref: (1, N) f32, o_ref: (tm, N)
    acc = jnp.dot(x_ref[...], w_ref[...], preferred_element_type=jnp.float32)
    o_ref[...] = (acc + b_ref[...]).astype(o_ref.dtype)


def _fused_kernel_nobias(x_ref, w_ref, o_ref):
    acc = jnp.dot(x_ref[...], w_ref[...], preferred_element_type=jnp.float32)
    o_ref[...] = acc.astype(o_ref.dtype)


def _block_diag_weight(w):
    """(nb, din, dout) -> (nb*din, nb*dout) with w[k] on the k-th diagonal block."""
    nb, din, dout = w.shape
    eye = jnp.eye(nb, dtype=w.dtype)
    w_bd = jnp.einsum("kde,kl->kdle", w, eye)        # zero off-diagonal blocks
    return w_bd.reshape(nb * din, nb * dout)


def _fused_forward(x, w, b, bias, compute_dtype):
    batch, nb, din = x.shape
    dout = w.shape[-1]
    K, N = nb * din, nb * dout
    out_dtype = x.dtype

    in_dtype = compute_dtype if compute_dtype is not None else x.dtype
    x2 = x.reshape(batch, K).astype(in_dtype)        # free contiguous reshape
    w_bd = _block_diag_weight(w.astype(in_dtype))    # (K, N), resident in VMEM

    # Batch tile: full batch if it fits, else 512 rows (multiple of 8).
    # VMEM @ tm=512, K=N=1024, f32: x 2MiB*2 + w 4MiB*2 + out 2MiB*2 ~= 16 MiB.
    tm = batch if batch <= 512 else 512
    grid = (pl.cdiv(batch, tm),)

    in_specs = [
        pl.BlockSpec((tm, K), lambda i: (i, 0)),
        pl.BlockSpec((K, N), lambda i: (0, 0)),      # constant index -> no re-DMA
    ]
    operands = [x2, w_bd]
    if bias:
        in_specs.append(pl.BlockSpec((1, N), lambda i: (0, 0)))
        operands.append(b.reshape(1, N).astype(jnp.float32))  # bias add stays f32
        kernel = _fused_kernel_bias
    else:
        kernel = _fused_kernel_nobias

    out2 = pl.pallas_call(
        kernel,
        out_shape=jax.ShapeDtypeStruct((batch, N), out_dtype),
        grid_spec=pltpu.PrefetchScalarGridSpec(
            num_scalar_prefetch=0,
            grid=grid,
            in_specs=in_specs,
            out_specs=pl.BlockSpec((tm, N), lambda i: (i, 0)),  # lane-dense output
        ),
        compiler_params=pltpu.CompilerParams(
            dimension_semantics=("parallel",),
            vmem_limit_bytes=_VMEM_LIMIT_BYTES,
        ),
    )(*operands)
    return out2.reshape(batch, nb, dout)             # free contiguous reshape


# ---------------------- per-block tiled path (large dims) -------------------------

def _block_kernel_bias(x_ref, w_ref, b_ref, o_ref, acc_ref):
    # x_ref: (tm, tk), w_ref: (tk, dout), b_ref: (1, dout) f32,
    # o_ref: (tm, dout), acc_ref: (tm, dout) f32
    @pl.when(pl.program_id(2) == 0)
    def _():
        acc_ref[...] = jnp.zeros_like(acc_ref)

    acc_ref[...] += jnp.dot(x_ref[...], w_ref[...],
                            preferred_element_type=jnp.float32)

    @pl.when(pl.program_id(2) == pl.num_programs(2) - 1)
    def _():
        o_ref[...] = (acc_ref[...] + b_ref[...]).astype(o_ref.dtype)


def _block_kernel_nobias(x_ref, w_ref, o_ref, acc_ref):
    @pl.when(pl.program_id(2) == 0)
    def _():
        acc_ref[...] = jnp.zeros_like(acc_ref)

    acc_ref[...] += jnp.dot(x_ref[...], w_ref[...],
                            preferred_element_type=jnp.float32)

    @pl.when(pl.program_id(2) == pl.num_programs(2) - 1)
    def _():
        o_ref[...] = acc_ref[...].astype(o_ref.dtype)


def _pick_tk(din):
    for tk in (512, 256, 128):
        if din % tk == 0:
            return tk
    return din  # unreachable: caller guarantees din % 128 == 0


def _per_block_forward(x, w, b, bias, compute_dtype):
    batch, nb, din = x.shape
    dout = w.shape[-1]
    out_dtype = x.dtype

    in_dtype = compute_dtype if compute_dtype is not None else x.dtype
    x2 = x.reshape(batch, nb * din).astype(in_dtype)   # free reshape, NO transpose
    w_c = w.astype(in_dtype)

    tm = batch if batch <= 256 else 256                # multiple of 8 or full dim
    tk = _pick_tk(din)                                 # multiple of 128, divides din
    kt = din // tk
    grid = (nb, pl.cdiv(batch, tm), kt)                # (block, batch_tile, k)

    in_specs = [
        # block g's K-slab of the flat x view: columns [g*din, (g+1)*din), tile k
        pl.BlockSpec((tm, tk), lambda g, i, k: (i, g * kt + k)),
        # block g's weight; independent of the batch-tile index
        pl.BlockSpec((None, tk, dout), lambda g, i, k: (g, k, 0)),
    ]
    operands = [x2, w_c]
    if bias:
        in_specs.append(pl.BlockSpec((None, 1, dout), lambda g, i, k: (g, 0, 0)))
        operands.append(b.reshape(nb, 1, dout).astype(jnp.float32))
        kernel = _block_kernel_bias
    else:
        kernel = _block_kernel_nobias

    out2 = pl.pallas_call(
        kernel,
        out_shape=jax.ShapeDtypeStruct((batch, nb * dout), out_dtype),
        grid_spec=pltpu.PrefetchScalarGridSpec(
            num_scalar_prefetch=0,
            grid=grid,
            in_specs=in_specs,
            out_specs=pl.BlockSpec((tm, dout), lambda g, i, k: (i, g)),
            scratch_shapes=[pltpu.VMEM((tm, dout), jnp.float32)],
        ),
        compiler_params=pltpu.CompilerParams(
            dimension_semantics=("parallel", "parallel", "arbitrary"),
            vmem_limit_bytes=_VMEM_LIMIT_BYTES,
        ),
    )(*operands)
    return out2.reshape(batch, nb, dout)               # free contiguous reshape


# -------------------------------- public wrapper ----------------------------------

@partial(jax.jit, static_argnames=("bias", "compute_dtype"))
def group_linear_layer(x, w, b=None, *, bias=True, compute_dtype=None):
    """out[n, k, :] = x[n, k, :] @ w[k] (+ b[0, k, :] if bias).

    x: (batch, num_blocks, din); w: (num_blocks, din, dout); b: (1, num_blocks, dout).
    compute_dtype: optional matmul-input dtype (e.g. jnp.bfloat16 on v6e/v7x);
    accumulation / bias add / output cast remain float32-exact in x.dtype.
    """
    batch, nb, din = x.shape
    assert w.shape[0] == nb and w.shape[1] == din
    dout = w.shape[-1]
    if bias:
        assert b is not None and b.shape == (1, nb, dout)

    small = (nb * din <= _FUSE_MAX_FLAT) and (nb * dout <= _FUSE_MAX_FLAT)
    tileable = (din % 128 == 0) and (dout % 128 == 0)
    if small or not tileable:
        # TODO(synk): very large, non-128-aligned per-block dims fall back to the
        # fused block-diagonal matmul, which pads FLOPs/memory by ~num_blocks x.
        return _fused_forward(x, w, b, bias, compute_dtype)
    return _per_block_forward(x, w, b, bias, compute_dtype)


def init_params(key, num_blocks, din, dout, dtype=jnp.float32):
    stdv = math.sqrt(6.0) / math.sqrt(din + dout)
    w = jax.random.uniform(key, (num_blocks, din, dout), dtype=dtype,
                           minval=-stdv, maxval=stdv)
    b = jnp.zeros((1, num_blocks, dout), dtype=dtype)
    return w, b


if __name__ == "__main__":
    key = jax.random.PRNGKey(0)
    kx, kw, k2x, k2w = jax.random.split(key, 4)

    # --- Sort-of-CLEVR-sized case: fused block-diagonal path (lane-dense N=128) ---
    batch, num_blocks, din, dout = 2, 4, 16, 32
    x = jax.random.normal(kx, (batch, num_blocks, din), dtype=jnp.float32)
    w, b = init_params(kw, num_blocks, din, dout)

    out = jax.block_until_ready(group_linear_layer(x, w, b, bias=True))
    ref = jnp.einsum("bkd,kde->bke", x, w,
                     precision=jax.lax.Precision.HIGHEST) + b
    assert out.shape == (batch, num_blocks, dout)
    assert jnp.allclose(out, ref, atol=1e-5, rtol=1e-5), "fused path mismatch"

    # bias=False uses a dedicated no-bias kernel (no zeros DMA, no add).
    out_nb = jax.block_until_ready(group_linear_layer(x, w, bias=False))
    ref_nb = jnp.einsum("bkd,kde->bke", x, w, precision=jax.lax.Precision.HIGHEST)
    assert jnp.allclose(out_nb, ref_nb, atol=1e-5, rtol=1e-5), "no-bias mismatch"

    # --- Larger per-block dims: tiled (block, batch_tile, k) path with accumulator ---
    B2, NB2, DIN2, DOUT2 = 16, 2, 768, 256
    x2 = jax.random.normal(k2x, (B2, NB2, DIN2), dtype=jnp.float32)
    w2, b2 = init_params(k2w, NB2, DIN2, DOUT2)
    out2 = jax.block_until_ready(group_linear_layer(x2, w2, b2, bias=True))
    ref2 = jnp.einsum("bkd,kde->bke", x2, w2,
                      precision=jax.lax.Precision.HIGHEST) + b2
    assert jnp.allclose(out2, ref2, atol=1e-4, rtol=1e-4), "per-block path mismatch"

    print("KERNEL_OK")
</pallas_src>

<mosaic_0001>
module attributes {stable_mosaic.version = 11 : i64} {
  func.func @_fused_kernel_bias(%arg0: i32, %arg1: memref<2x64xf32, #tpu.memory_space<vmem>>, %arg2: memref<64x128xf32, #tpu.memory_space<vmem>>, %arg3: memref<1x128xf32, #tpu.memory_space<vmem>>, %arg4: memref<2x128xf32, #tpu.memory_space<vmem>>) attributes {dimension_semantics = [#tpu.dimension_semantics<parallel>], iteration_bounds = array<i64: 1>, scalar_prefetch = 0 : i64, scratch_operands = 0 : i64, tpu.core_type = #tpu.core_type<tc>, window_params = [{transform_indices = @transform_0, window_bounds = array<i64: 2, 64>}, {pipeline_mode = #tpu.pipeline_mode<synchronous>, transform_indices = @transform_1, window_bounds = array<i64: 64, 128>}, {pipeline_mode = #tpu.pipeline_mode<synchronous>, transform_indices = @transform_2, window_bounds = array<i64: 1, 128>}, {transform_indices = @transform_3, window_bounds = array<i64: 2, 128>}]} {
    %c0 = arith.constant 0 : index
    %c0_0 = arith.constant 0 : index
    %0 = vector.load %arg1[%c0, %c0_0] : memref<2x64xf32, #tpu.memory_space<vmem>>, vector<2x64xf32>
    %c0_1 = arith.constant 0 : index
    %c0_2 = arith.constant 0 : index
    %1 = vector.load %arg2[%c0_1, %c0_2] : memref<64x128xf32, #tpu.memory_space<vmem>>, vector<64x128xf32>
    %cst = arith.constant dense<0.000000e+00> : vector<2x128xf32>
    %2 = tpu.matmul %0, %1, %cst {dimension_numbers = #tpu.dot_dimension_numbers<[1], [0], [0], [1], [0, 0, 1, 1], [], []>} : vector<2x64xf32>, vector<64x128xf32>, vector<2x128xf32> -> vector<2x128xf32>
    %c0_3 = arith.constant 0 : index
    %c0_4 = arith.constant 0 : index
    %3 = vector.load %arg3[%c0_3, %c0_4] : memref<1x128xf32, #tpu.memory_space<vmem>>, vector<1x128xf32>
    %4 = vector.broadcast %3 : vector<1x128xf32> to vector<2x128xf32>
    %5 = arith.addf %2, %4 : vector<2x128xf32>
    %c0_5 = arith.constant 0 : index
    %c0_6 = arith.constant 0 : index
    %6 = vector.load %arg4[%c0_5, %c0_6] : memref<2x128xf32, #tpu.memory_space<vmem>>, vector<2x128xf32>
    tpu.vector_store %arg4[%c0_5, %c0_6], %5 {strides = array<i32>} : memref<2x128xf32, #tpu.memory_space<vmem>>, vector<2x128xf32>,
    return
  }
  func.func @transform_0(%arg0: i32) -> (i32, i32) {
    %c0_i32 = arith.constant 0 : i32
    %c0_i32_0 = arith.constant 0 : i32
    return %arg0, %c0_i32 : i32, i32
  }
  func.func @transform_1(%arg0: i32) -> (i32, i32) {
    %c0_i32 = arith.constant 0 : i32
    %c0_i32_0 = arith.constant 0 : i32
    %c0_i32_1 = arith.constant 0 : i32
    return %c0_i32, %c0_i32_0 : i32, i32
  }
  func.func @transform_2(%arg0: i32) -> (i32, i32) {
    %c0_i32 = arith.constant 0 : i32
    %c0_i32_0 = arith.constant 0 : i32
    %c0_i32_1 = arith.constant 0 : i32
    return %c0_i32, %c0_i32_0 : i32, i32
  }
  func.func @transform_3(%arg0: i32) -> (i32, i32) {
    %c0_i32 = arith.constant 0 : i32
    %c0_i32_0 = arith.constant 0 : i32
    return %arg0, %c0_i32 : i32, i32
  }
}

</mosaic_0001>

<llo_original>
// kernel: group_linear_layer.1
$region0: #{group_linear_layer.1}
  #allocation0 [shape = 'u32[]', space=smem, size = 0x4, offset = 0x4, fixed_abs, tag = 'smem constant byte address 0x4 - core index']
  #allocation1 [shape = 'u32[144,128]{1,0:T(1,128)}', space=vmem, size = 0x12000, scoped, tag = 'internal scratch']
  %s0 = inlined_call_operand.vmem [shape: f32[2,64], index: 0, kind: input, shape index: {}]
  %s1 = inlined_call_operand.vmem [shape: f32[64,128], index: 1, kind: input, shape index: {}]
  %s2 = inlined_call_operand.vmem [shape: f32[1,128], index: 2, kind: input, shape index: {}]
  %s3 = inlined_call_operand.vmem [shape: f32[2,128], index: 3, kind: output, shape index: {}]
  %s4 = sld [smem:[#allocation0]]
  $region22: #{group_linear_layer.1} parent=0
    _
  %s6 = ssub.s32 1, %s4
  %s7 = scalar_select 0, %s6, %s4
  // Predicated region
  $region2: #{group_linear_layer.1} parent=0 // pred_check
    _
  $region3: #{group_linear_layer.1} parent=0 // pred_check_branch
    %9 = sbr.rel (0) target = $region5
  $region4: #{group_linear_layer.1} parent=0 // pred_region
    _
  $region5: #{group_linear_layer.1} parent=0 // pred_fallthru
    _
  // Predicated region
  $region6: #{group_linear_layer.1} parent=0 // pred_check
    _
  $region7: #{group_linear_layer.1} parent=0 // pred_check_branch
    %11 = sbr.rel (0) target = $region9
  $region8: #{group_linear_layer.1} parent=0 // pred_region
    _
  $region9: #{group_linear_layer.1} parent=0 // pred_fallthru
    _
  // Predicated region
  $region10: #{group_linear_layer.1} parent=0 // pred_check
    _
  $region11: #{group_linear_layer.1} parent=0 // pred_check_branch
    %13 = sbr.rel (0) target = $region13
  $region12: #{group_linear_layer.1} parent=0 // pred_region
    _
  $region13: #{group_linear_layer.1} parent=0 // pred_fallthru
    _
  %v14 = vld [vmem:[%s0] sm:$0x3]
  %v15 = vld [vmem:[%s1] sm:$0xff]
  %v16 = vld [vmem:[%s1 + $0x8] sm:$0xff]
  %v17 = vld [vmem:[%s1 + $0x10] sm:$0xff]
  %v18 = vld [vmem:[%s1 + $0x18] sm:$0xff]
  %v19 = vld [vmem:[%s1 + $0x20] sm:$0xff]
  %v20 = vld [vmem:[%s1 + $0x28] sm:$0xff]
  %v21 = vld [vmem:[%s1 + $0x30] sm:$0xff]
  %v22 = vld [vmem:[%s1 + $0x38] sm:$0xff]
  %v23 = vld [vmem:[%s2] sm:$0x1]
  %v25 = vlaneseq
  %v26 = vshrl.u32 %v25, 7
  %v27 = vsub.s32 0, %v26
  %v28 = vrot.slane %v23, %v27
  %vm30 = vcmask 523264
  %v32 = vsel %vm30, %v14, 0
  %34 = vmatprep.subr.mxu0 0.0
  %35 = vmatpush1.msra.mxu0 %v15
  %36 = vmatprep.subr.mxu0 0.0
  %37 = vmatpush1.msra.mxu0 %v16
  %38 = vmatprep.subr.mxu0 0.0
  %39 = vmatpush1.msra.mxu0 %v17
  %40 = vmatprep.subr.mxu0 0.0
  %41 = vmatpush1.msra.mxu0 %v18
  %42 = vmatprep.subr.mxu0 0.0
  %43 = vmatpush1.msra.mxu0 %v19
  %44 = vmatprep.subr.mxu0 0.0
  %45 = vmatpush1.msra.mxu0 %v20
  %46 = vmatprep.subr.mxu0 0.0
  %47 = vmatpush1.msra.mxu0 %v21
  %48 = vmatprep.subr.mxu0 0.0
  %49 = vmatpush1.msra.mxu0 %v22
  %50 = vmatprep.subr.mxu0 0.0
  %51 = vmatpush1.msra.mxu0 0.0
  %52 = vmatprep.subr.mxu0 0.0
  %53 = vmatpush1.msra.mxu0 0.0
  %54 = vmatprep.subr.mxu0 0.0
  %55 = vmatpush1.msra.mxu0 0.0
  %56 = vmatprep.subr.mxu0 0.0
  %57 = vmatpush1.msra.mxu0 0.0
  %58 = vmatprep.subr.mxu0 0.0
  %59 = vmatpush1.msra.mxu0 0.0
  %60 = vmatprep.subr.mxu0 0.0
  %61 = vmatpush1.msra.mxu0 0.0
  %62 = vmatprep.subr.mxu0 0.0
  %63 = vmatpush1.msra.mxu0 0.0
  %64 = vmatprep.subr.mxu0 0.0
  %65 = vmatpush1.msra.mxu0 0.0
  %66 = vmatprep.subr.mxu0 0.0
  %67 = vmatpush1.msra.mxu0 0.0
  %68 = vmatprep.subr.mxu0 0.0
  %69 = vmatpush1.msra.mxu0 0.0
  %70 = vmatprep.subr.mxu0 0.0
  %71 = vmatpush1.msra.mxu0 0.0
  %72 = vmatprep.subr.mxu0 0.0
  %73 = vmatpush1.msra.mxu0 0.0
  %74 = vmatprep.subr.mxu0 0.0
  %75 = vmatpush1.msra.mxu0 0.0
  %76 = vmatprep.subr.mxu0 0.0
  %77 = vmatpush1.msra.mxu0 0.0
  %78 = vmatprep.subr.mxu0 0.0
  %79 = vmatpush1.msra.mxu0 0.0
  %80 = vmatprep.subr.mxu0 0.0
  %81 = vmatpush1.msra.mxu0 0.0
  %82 = vmatprep.subr.mxu0 0.0
  %83 = vmatpush1.msra.mxu0 0.0
  %84 = vmatprep.subr.mxu0 0.0
  %85 = vmatpush1.msra.mxu0 0.0
  %86 = vmatprep.subr.mxu0 0.0
  %87 = vmatpush1.msra.mxu0 0.0
  %88 = vmatprep.subr.mxu0 0.0
  %89 = vmatpush1.msra.mxu0 0.0
  %90 = vmatprep.subr.mxu0 0.0
  %91 = vmatpush1.msra.mxu0 0.0
  %92 = vmatprep.subr.mxu0 0.0
  %93 = vmatpush1.msra.mxu0 0.0
  %94 = vmatprep.subr.mxu0 0.0
  %95 = vmatpush1.msra.mxu0 0.0
  %96 = vmatprep.subr.mxu0 0.0
  %97 = vmatpush1.msra.mxu0 0.0
  %98 = vmatprep.mubr.f32.mxu0 0.0
  %99 = vmatmul.mubr.f32.gmra.mrb[0].mxu0 %v32
  %v100 = vpop.f32.mrb[0].mxu0
  %v101 = vadd.f32 %v28, %v100
  %v102 = vpop.f32.mrb[0].mxu0
  %103 = vdwg.mxu0
  %104 = vst [vmem:[%s3] sm:$0x3] %v101
  // Predicated region
  $region14: #{group_linear_layer.1} parent=0 // pred_check
    _
  $region15: #{group_linear_layer.1} parent=0 // pred_check_branch
    %106 = sbr.rel (0) target = $region17
  $region16: #{group_linear_layer.1} parent=0 // pred_region
    _
  $region17: #{group_linear_layer.1} parent=0 // pred_fallthru
    _
  // Predicated region
  $region18: #{group_linear_layer.1} parent=0 // pred_check
    _
  $region19: #{group_linear_layer.1} parent=0 // pred_check_branch
    %108 = sbr.rel (0) target = $region21
  $region20: #{group_linear_layer.1} parent=0 // pred_region
    _
  $region21: #{group_linear_layer.1} parent=0 // pred_fallthru
    _

</llo_original>
